<compile_context>
chip_gen: v7x
topology: tpu7x:2x2x1
jax: 0.10.0
libtpu: 0.0.40
codegen_flags: <defaults>
</compile_context>

<pallas_src>
import jax
import jax.numpy as jnp
from jax.experimental import pallas as pl
from jax.experimental.pallas import tpu as pltpu


def _round_up(x, m):
    return ((x + m - 1) // m) * m


def _seg_embed_kernel(seg_ref, table_ref, out_ref):
    # seg_ref  : (T, 1)  int32  -- rows in sublanes, single lane
    # table_ref: (2, D)  float  -- D in lanes (resident across the grid)
    # out_ref  : (T, D)  float
    m = seg_ref[...] != 0                      # (T, 1) bool, lane-splat broadcast
    e0 = table_ref[0:1, :]                     # (1, D)
    e1 = table_ref[1:2, :]                     # (1, D)
    out_ref[...] = jnp.where(m, e1, e0).astype(out_ref.dtype)


def _pick_tile_rows(n_rows, d, itemsize, vmem_per_buf=4 * 1024 * 1024):
    """Rows per block: multiple of 8, <= 2048, output buffer <= ~4 MiB."""
    tr = vmem_per_buf // max(1, d * itemsize)
    tr = max(8, min(2048, tr))
    tr = (tr // 8) * 8
    tr = min(tr, _round_up(n_rows, 8))
    return max(8, tr)


def segmentation_embedding(segments, table):
    """segments: (B, S) int in {0,1}; table: (2, D) float -> (B, S, D)."""
    B, S = segments.shape
    _, D = table.shape
    N = B * S

    tr = _pick_tile_rows(N, D, jnp.dtype(table.dtype).itemsize)
    Np = _round_up(N, tr)

    seg_flat = segments.reshape(N).astype(jnp.int32)
    if Np != N:
        seg_flat = jnp.pad(seg_flat, (0, Np - N))
    seg_flat = seg_flat.reshape(Np, 1)         # rows -> sublanes, 1 lane

    out_flat = pl.pallas_call(
        _seg_embed_kernel,
        out_shape=jax.ShapeDtypeStruct((Np, D), table.dtype),
        grid=(Np // tr,),
        in_specs=[
            pl.BlockSpec((tr, 1), lambda i: (i, 0)),   # per-row segment ids
            pl.BlockSpec((2, D), lambda i: (0, 0)),    # table: constant block, stays resident
        ],
        out_specs=pl.BlockSpec((tr, D), lambda i: (i, 0)),  # lane-dense output tile
        compiler_params=pltpu.CompilerParams(
            dimension_semantics=("parallel",),         # shard rows across TCs (v7x megacore)
        ),
    )(seg_flat, table)

    return out_flat[:N].reshape(B, S, D)


if __name__ == "__main__":
    # Small shapes consistent with the module's forward().
    B, S, D = 2, 8, 32

    key = jax.random.PRNGKey(0)
    k_tab, k_seg = jax.random.split(key)

    # Deterministic parameter init (nn.Embedding(2, dim).weight ~ N(0, 1)).
    table = jax.random.normal(k_tab, (2, D), dtype=jnp.float32)

    # Batch of segment ids consisting of 0's and 1's.
    segments = jax.random.randint(k_seg, (B, S), minval=0, maxval=2, dtype=jnp.int32)

    out = segmentation_embedding(segments, table)
    out = jax.block_until_ready(out)

    # Reference: plain embedding lookup.
    ref = table[segments]
    assert out.shape == (B, S, D)
    assert jnp.allclose(out, ref), "mismatch vs reference embedding lookup"

    print("KERNEL_OK")
</pallas_src>

<mosaic_0001>
module attributes {stable_mosaic.version = 11 : i64} {
  func.func @_seg_embed_kernel(%arg0: i32, %arg1: memref<16x1xi32, #tpu.memory_space<vmem>>, %arg2: memref<2x32xf32, #tpu.memory_space<vmem>>, %arg3: memref<16x32xf32, #tpu.memory_space<vmem>>) attributes {dimension_semantics = [#tpu.dimension_semantics<parallel>], iteration_bounds = array<i64: 1>, scalar_prefetch = 0 : i64, scratch_operands = 0 : i64, tpu.core_type = #tpu.core_type<tc>, window_params = [{transform_indices = @transform_0, window_bounds = array<i64: 16, 1>}, {pipeline_mode = #tpu.pipeline_mode<synchronous>, transform_indices = @transform_1, window_bounds = array<i64: 2, 32>}, {transform_indices = @transform_2, window_bounds = array<i64: 16, 32>}]} {
    %c0 = arith.constant 0 : index
    %c0_0 = arith.constant 0 : index
    %0 = vector.load %arg1[%c0, %c0_0] : memref<16x1xi32, #tpu.memory_space<vmem>>, vector<16x1xi32>
    %c0_i32 = arith.constant 0 : i32
    %1 = vector.broadcast %c0_i32 : i32 to vector<16x1xi32>
    %2 = arith.cmpi ne, %0, %1 : vector<16x1xi32>
    %c0_1 = arith.constant 0 : index
    %c0_2 = arith.constant 0 : index
    %3 = vector.load %arg2[%c0_1, %c0_2] : memref<2x32xf32, #tpu.memory_space<vmem>>, vector<1x32xf32>
    %c1 = arith.constant 1 : index
    %c0_3 = arith.constant 0 : index
    %4 = vector.load %arg2[%c1, %c0_3] : memref<2x32xf32, #tpu.memory_space<vmem>>, vector<1x32xf32>
    %5 = vector.shape_cast %2 : vector<16x1xi1> to vector<16x1xi1>
    %6 = vector.broadcast %5 : vector<16x1xi1> to vector<16x32xi1>
    %7 = vector.shape_cast %4 : vector<1x32xf32> to vector<1x32xf32>
    %8 = vector.broadcast %7 : vector<1x32xf32> to vector<16x32xf32>
    %9 = vector.shape_cast %3 : vector<1x32xf32> to vector<1x32xf32>
    %10 = vector.broadcast %9 : vector<1x32xf32> to vector<16x32xf32>
    %11 = arith.select %6, %8, %10 : vector<16x32xi1>, vector<16x32xf32>
    %c0_4 = arith.constant 0 : index
    %c0_5 = arith.constant 0 : index
    %12 = vector.load %arg3[%c0_4, %c0_5] : memref<16x32xf32, #tpu.memory_space<vmem>>, vector<16x32xf32>
    tpu.vector_store %arg3[%c0_4, %c0_5], %11 {strides = array<i32>} : memref<16x32xf32, #tpu.memory_space<vmem>>, vector<16x32xf32>,
    return
  }
  func.func @transform_0(%arg0: i32) -> (i32, i32) {
    %c0_i32 = arith.constant 0 : i32
    %c0_i32_0 = arith.constant 0 : i32
    return %arg0, %c0_i32 : i32, i32
  }
  func.func @transform_1(%arg0: i32) -> (i32, i32) {
    %c0_i32 = arith.constant 0 : i32
    %c0_i32_0 = arith.constant 0 : i32
    %c0_i32_1 = arith.constant 0 : i32
    return %c0_i32, %c0_i32_0 : i32, i32
  }
  func.func @transform_2(%arg0: i32) -> (i32, i32) {
    %c0_i32 = arith.constant 0 : i32
    %c0_i32_0 = arith.constant 0 : i32
    return %arg0, %c0_i32 : i32, i32
  }
}

</mosaic_0001>

<llo_original>
// kernel: tpu_custom_call.1
$region0: #{tpu_custom_call.1}
  #allocation0 [shape = 'u32[]', space=smem, size = 0x4, offset = 0x4, fixed_abs, tag = 'smem constant byte address 0x4 - core index']
  #allocation1 [shape = 'u32[144,128]{1,0:T(1,128)}', space=vmem, size = 0x12000, scoped, tag = 'internal scratch']
  %s0 = inlined_call_operand.vmem [shape: s32[16,1], index: 0, kind: input, shape index: {}]
  %s1 = inlined_call_operand.vmem [shape: f32[2,32], index: 1, kind: input, shape index: {}]
  %s2 = inlined_call_operand.hbm [shape: f32[16,32], index: 2, kind: output, shape index: {}]
  %s3 = sld [smem:[#allocation0]]
  $region18: #{tpu_custom_call.1} parent=0
    _
  %s5 = ssub.s32 1, %s3
  %s6 = scalar_select 0, %s5, %s3
  $region1: #{tpu_custom_call.1} parent=0
    #allocation2 [shape = 'u8[8192]{0}', space=vmem, size = 0x2000, scoped, tag = 'output window, operand 0, single buffered']
    #allocation3 [shape = 's32[1]{0}', space=sflag, size = 0x4, scoped, tag = 'scoped memory for tpu_custom_call.1']
    %7 = vsyncpa [#allocation3], 0
    // Predicated region
    $region2: #{tpu_custom_call.1} parent=1 // pred_check
      _
    $region3: #{tpu_custom_call.1} parent=1 // pred_check_branch
      %9 = sbr.rel (0) target = $region5
    $region4: #{tpu_custom_call.1} parent=1 // pred_region
      _
    $region5: #{tpu_custom_call.1} parent=1 // pred_fallthru
      _
    // Predicated region
    $region6: #{tpu_custom_call.1} parent=1 // pred_check
      _
    $region7: #{tpu_custom_call.1} parent=1 // pred_check_branch
      %11 = sbr.rel (0) target = $region9
    $region8: #{tpu_custom_call.1} parent=1 // pred_region
      _
    $region9: #{tpu_custom_call.1} parent=1 // pred_fallthru
      _
    %v12 = vld [vmem:[%s0] sm:$0xff]
    %v13 = vld [vmem:[%s0 + $0x8] sm:$0xff]
    %vm14 = vcmp.ne.s32.totalorder %v12, 0
    %vm15 = vcmp.ne.s32.totalorder %v13, 0
    %v16 = vld [vmem:[%s1] sm:$0x1]
    %v17 = vld [vmem:[%s1 + $0x1] sm:$0x1]
    %v18 = vsel %vm14, 1, 0
    %v19 = vsel %vm15, 1, 0
    %20 = vset.pattern.permute.xlu0 0
    %21 = vperm.xlu0 %20, %v18
    %v22 = vpop.permute.xlu0 %21
    %23 = vset.pattern.permute.xlu0 0
    %24 = vperm.xlu0 %23, %v19
    %v25 = vpop.permute.xlu0 %24
    %vm26 = vcmp.eq.s32.totalorder %v22, 1
    %vm27 = vcmp.eq.s32.totalorder %v25, 1
    %v28 = vlaneseq
    %v29 = vshrl.u32 %v28, 7
    %v30 = vsub.s32 0, %v29
    %v31 = vrot.slane %v17, %v30
    %v32 = vlaneseq
    %v33 = vshrl.u32 %v32, 7
    %v34 = vsub.s32 0, %v33
    %v35 = vrot.slane %v16, %v34
    %v36 = vsel %vm26, %v31, %v35
    %v37 = vsel %vm27, %v31, %v35
    %vm38 = vcmask 261120
    %39 = vst.msk [vmem:[#allocation2] sm:$0xff] %vm38, %v36
    %40 = vst.msk [vmem:[#allocation2 + $0x8] sm:$0xff] %vm38, %v37
    // Predicated region
    $region10: #{tpu_custom_call.1} parent=1 // pred_check
      _
    $region11: #{tpu_custom_call.1} parent=1 // pred_check_branch
      %42 = sbr.rel (0) target = $region13
    $region12: #{tpu_custom_call.1} parent=1 // pred_region
      %s44 = ssub.s32 256, 256
      %45 = vsyncadd [#allocation3], %s44
      %s46 = sshll.u32 [#allocation2], 4
      %s47 = int_to_ptr.vmem [resolvable:$true] %s46
      %52 = dma.vmem_to_hbm [thread:$0]  %s47, 256, %s2, [#allocation3], 128, 128, 8
    $region13: #{tpu_custom_call.1} parent=1 // pred_fallthru
      _
    // Predicated region
    $region14: #{tpu_custom_call.1} parent=1 // pred_check
      _
    $region15: #{tpu_custom_call.1} parent=1 // pred_check_branch
      %54 = sbr.rel (0) target = $region17
    $region16: #{tpu_custom_call.1} parent=1 // pred_region
      %55 = dma.done [#allocation3], 256
    $region17: #{tpu_custom_call.1} parent=1 // pred_fallthru
      _
    %56 = vsyncpa [#allocation3], 1

</llo_original>
